<compile_context>
chip_gen: v6e
topology: v6e:2x2x1
jax: 0.10.0
libtpu: 0.0.40
codegen_flags: <defaults>
</compile_context>

<pallas_src>
import jax
import jax.numpy as jnp
from jax import lax
from jax.experimental import pallas as pl
from jax.experimental.pallas import tpu as pltpu


def rnn_kernel(x_ref, h0_ref, w_ih_t_ref, w_hh_t_ref, b_rnn_ref,
               w_fc_t_ref, b_fc_ref, out_ref):
    """Full RNN recurrence + fc head, everything VMEM/vreg resident.

    x_ref      : (T*B, I)    flattened time-major input
    h0_ref     : (B, H)      initial hidden state
    w_ih_t_ref : (I, H)      W_ih^T
    w_hh_t_ref : (H, H)      W_hh^T
    b_rnn_ref  : (1, H)      b_ih + b_hh (folded in wrapper)
    w_fc_t_ref : (H, IPAD)   W_fc^T, zero-padded on the lane dim to 128
    b_fc_ref   : (1, IPAD)   b_fc, zero-padded
    out_ref    : (T*B, IPAD) fc output (pad columns are zero)
    """
    tb = x_ref.shape[0]
    b, _ = h0_ref.shape
    t_steps = tb // b

    # (1) Hoisted input projection: one MXU pass over all time steps, with the
    #     combined bias broadcast-added exactly once (not inside the loop).
    xw = (jnp.dot(x_ref[...], w_ih_t_ref[...],
                  preferred_element_type=jnp.float32)
          + b_rnn_ref[...])                                    # (T*B, H)

    w_hh_t = w_hh_t_ref[...]                                   # hoisted load

    # (2) Serial recurrence, fully unrolled; hidden state stays in vregs.
    #     Per-step critical path: one (B,H)x(H,H) matmul + tanh (EUP).
    h = h0_ref[...]                                            # (B, H)
    hs = []
    for t in range(t_steps):
        pre = xw[t * b:(t + 1) * b, :] + jnp.dot(
            h, w_hh_t, preferred_element_type=jnp.float32)
        h = jnp.tanh(pre)
        hs.append(h)

    hs_all = jnp.concatenate(hs, axis=0)                       # (T*B, H)

    # (3) Hoisted fc head: one (T*B, H) x (H, IPAD) matmul and a single
    #     lane-dense store of the whole output.
    out_ref[...] = (jnp.dot(hs_all, w_fc_t_ref[...],
                            preferred_element_type=jnp.float32)
                    + b_fc_ref[...])


def rnn_forward(x, h0, params):
    """x: (T, B, I) f32, h0: (1, B, H) f32 -> (T, B, I) f32."""
    w_ih, w_hh, b_ih, b_hh, w_fc, b_fc = params
    T, B, I = x.shape
    H = w_hh.shape[0]

    # Wrapper-side layout plumbing (free relative to in-kernel masked stores):
    x_flat = x.reshape(T * B, I)                    # flatten time*batch rows
    h0_2d = h0[0]                                   # (B, H)
    b_rnn = (b_ih + b_hh).reshape(1, H)             # fold the two RNN biases

    # Pad the fc output lane dim to a multiple of 128 so the kernel's single
    # output store is unmasked / lane-dense; slice the pad off afterwards.
    ipad = ((I + 127) // 128) * 128
    w_fc_t_pad = jnp.zeros((H, ipad), jnp.float32).at[:, :I].set(w_fc.T)
    b_fc_pad = jnp.zeros((1, ipad), jnp.float32).at[:, :I].set(b_fc.reshape(1, I))

    vmem = pl.BlockSpec(memory_space=pltpu.MemorySpace.VMEM)
    out_padded = pl.pallas_call(
        rnn_kernel,
        out_shape=jax.ShapeDtypeStruct((T * B, ipad), jnp.float32),
        in_specs=[vmem] * 7,
        out_specs=vmem,
    )(
        x_flat,
        h0_2d,
        w_ih.T,                                     # (I, H)
        w_hh.T,                                     # (H, H)
        b_rnn,                                      # (1, H)
        w_fc_t_pad,                                 # (H, IPAD)
        b_fc_pad,                                   # (1, IPAD)
    )
    return out_padded[:, :I].reshape(T, B, I)


def init_params(key, input_size, hidden_dim):
    """Deterministic init mimicking PyTorch's U(-1/sqrt(H), 1/sqrt(H))."""
    k = 1.0 / jnp.sqrt(hidden_dim)
    keys = jax.random.split(key, 6)
    w_ih = jax.random.uniform(keys[0], (hidden_dim, input_size), jnp.float32, -k, k)
    w_hh = jax.random.uniform(keys[1], (hidden_dim, hidden_dim), jnp.float32, -k, k)
    b_ih = jax.random.uniform(keys[2], (hidden_dim,), jnp.float32, -k, k)
    b_hh = jax.random.uniform(keys[3], (hidden_dim,), jnp.float32, -k, k)
    w_fc = jax.random.uniform(keys[4], (input_size, hidden_dim), jnp.float32, -k, k)
    b_fc = jax.random.uniform(keys[5], (input_size,), jnp.float32, -k, k)
    return (w_ih, w_hh, b_ih, b_hh, w_fc, b_fc)


def rnn_reference(x, h0, params):
    """Pure-JAX reference matching torch.nn.RNN + Linear semantics."""
    w_ih, w_hh, b_ih, b_hh, w_fc, b_fc = params
    h = h0[0]

    def step(h, x_t):
        h = jnp.tanh(x_t @ w_ih.T + b_ih + h @ w_hh.T + b_hh)
        return h, h

    _, hs = lax.scan(step, h, x)               # (T, B, H)
    return hs @ w_fc.T + b_fc                  # (T, B, I)


if __name__ == "__main__":
    seq_len, batch, input_size, hidden_dim = 8, 2, 1, 32

    key = jax.random.PRNGKey(0)
    k_x, k_h, k_p = jax.random.split(key, 3)

    x = jax.random.normal(k_x, (seq_len, batch, input_size), jnp.float32)
    h0 = jax.random.normal(k_h, (1, batch, hidden_dim), jnp.float32)
    params = init_params(k_p, input_size, hidden_dim)

    out = rnn_forward(x, h0, params)
    out = jax.block_until_ready(out)

    ref = rnn_reference(x, h0, params)
    assert out.shape == (seq_len, batch, input_size)
    assert jnp.allclose(out, ref, atol=1e-5, rtol=1e-5), "mismatch vs reference"

    print("KERNEL_OK")
</pallas_src>

<mosaic_0001>
module attributes {stable_mosaic.version = 11 : i64} {
  func.func @rnn_kernel(%arg0: memref<16x1xf32, #tpu.memory_space<vmem>>, %arg1: memref<2x32xf32, #tpu.memory_space<vmem>>, %arg2: memref<1x32xf32, #tpu.memory_space<vmem>>, %arg3: memref<32x32xf32, #tpu.memory_space<vmem>>, %arg4: memref<1x32xf32, #tpu.memory_space<vmem>>, %arg5: memref<32x128xf32, #tpu.memory_space<vmem>>, %arg6: memref<1x128xf32, #tpu.memory_space<vmem>>, %arg7: memref<16x128xf32, #tpu.memory_space<vmem>>) attributes {dimension_semantics = [], scalar_prefetch = 0 : i64, scratch_operands = 0 : i64, tpu.core_type = #tpu.core_type<tc>} {
    %c0 = arith.constant 0 : index
    %c0_0 = arith.constant 0 : index
    %0 = vector.load %arg0[%c0, %c0_0] : memref<16x1xf32, #tpu.memory_space<vmem>>, vector<16x1xf32>
    %c0_1 = arith.constant 0 : index
    %c0_2 = arith.constant 0 : index
    %1 = vector.load %arg2[%c0_1, %c0_2] : memref<1x32xf32, #tpu.memory_space<vmem>>, vector<1x32xf32>
    %cst = arith.constant dense<0.000000e+00> : vector<16x32xf32>
    %2 = tpu.matmul %0, %1, %cst {dimension_numbers = #tpu.dot_dimension_numbers<[1], [0], [0], [1], [0, 0, 1, 1], [], []>} : vector<16x1xf32>, vector<1x32xf32>, vector<16x32xf32> -> vector<16x32xf32>
    %c0_3 = arith.constant 0 : index
    %c0_4 = arith.constant 0 : index
    %3 = vector.load %arg4[%c0_3, %c0_4] : memref<1x32xf32, #tpu.memory_space<vmem>>, vector<1x32xf32>
    %4 = vector.broadcast %3 : vector<1x32xf32> to vector<16x32xf32>
    %5 = arith.addf %2, %4 : vector<16x32xf32>
    %c0_5 = arith.constant 0 : index
    %c0_6 = arith.constant 0 : index
    %6 = vector.load %arg3[%c0_5, %c0_6] : memref<32x32xf32, #tpu.memory_space<vmem>>, vector<32x32xf32>
    %c0_7 = arith.constant 0 : index
    %c0_8 = arith.constant 0 : index
    %7 = vector.load %arg1[%c0_7, %c0_8] : memref<2x32xf32, #tpu.memory_space<vmem>>, vector<2x32xf32>
    %8 = vector.extract_strided_slice %5 {offsets = [0, 0], sizes = [2, 32], strides = [1, 1]} : vector<16x32xf32> to vector<2x32xf32>
    %cst_9 = arith.constant dense<0.000000e+00> : vector<2x32xf32>
    %9 = tpu.matmul %7, %6, %cst_9 {dimension_numbers = #tpu.dot_dimension_numbers<[1], [0], [0], [1], [0, 0, 1, 1], [], []>} : vector<2x32xf32>, vector<32x32xf32>, vector<2x32xf32> -> vector<2x32xf32>
    %10 = arith.addf %8, %9 : vector<2x32xf32>
    %11 = math.tanh %10 : vector<2x32xf32>
    %12 = vector.extract_strided_slice %5 {offsets = [2, 0], sizes = [2, 32], strides = [1, 1]} : vector<16x32xf32> to vector<2x32xf32>
    %cst_10 = arith.constant dense<0.000000e+00> : vector<2x32xf32>
    %13 = tpu.matmul %11, %6, %cst_10 {dimension_numbers = #tpu.dot_dimension_numbers<[1], [0], [0], [1], [0, 0, 1, 1], [], []>} : vector<2x32xf32>, vector<32x32xf32>, vector<2x32xf32> -> vector<2x32xf32>
    %14 = arith.addf %12, %13 : vector<2x32xf32>
    %15 = math.tanh %14 : vector<2x32xf32>
    %16 = vector.extract_strided_slice %5 {offsets = [4, 0], sizes = [2, 32], strides = [1, 1]} : vector<16x32xf32> to vector<2x32xf32>
    %cst_11 = arith.constant dense<0.000000e+00> : vector<2x32xf32>
    %17 = tpu.matmul %15, %6, %cst_11 {dimension_numbers = #tpu.dot_dimension_numbers<[1], [0], [0], [1], [0, 0, 1, 1], [], []>} : vector<2x32xf32>, vector<32x32xf32>, vector<2x32xf32> -> vector<2x32xf32>
    %18 = arith.addf %16, %17 : vector<2x32xf32>
    %19 = math.tanh %18 : vector<2x32xf32>
    %20 = vector.extract_strided_slice %5 {offsets = [6, 0], sizes = [2, 32], strides = [1, 1]} : vector<16x32xf32> to vector<2x32xf32>
    %cst_12 = arith.constant dense<0.000000e+00> : vector<2x32xf32>
    %21 = tpu.matmul %19, %6, %cst_12 {dimension_numbers = #tpu.dot_dimension_numbers<[1], [0], [0], [1], [0, 0, 1, 1], [], []>} : vector<2x32xf32>, vector<32x32xf32>, vector<2x32xf32> -> vector<2x32xf32>
    %22 = arith.addf %20, %21 : vector<2x32xf32>
    %23 = math.tanh %22 : vector<2x32xf32>
    %24 = vector.extract_strided_slice %5 {offsets = [8, 0], sizes = [2, 32], strides = [1, 1]} : vector<16x32xf32> to vector<2x32xf32>
    %cst_13 = arith.constant dense<0.000000e+00> : vector<2x32xf32>
    %25 = tpu.matmul %23, %6, %cst_13 {dimension_numbers = #tpu.dot_dimension_numbers<[1], [0], [0], [1], [0, 0, 1, 1], [], []>} : vector<2x32xf32>, vector<32x32xf32>, vector<2x32xf32> -> vector<2x32xf32>
    %26 = arith.addf %24, %25 : vector<2x32xf32>
    %27 = math.tanh %26 : vector<2x32xf32>
    %28 = vector.extract_strided_slice %5 {offsets = [10, 0], sizes = [2, 32], strides = [1, 1]} : vector<16x32xf32> to vector<2x32xf32>
    %cst_14 = arith.constant dense<0.000000e+00> : vector<2x32xf32>
    %29 = tpu.matmul %27, %6, %cst_14 {dimension_numbers = #tpu.dot_dimension_numbers<[1], [0], [0], [1], [0, 0, 1, 1], [], []>} : vector<2x32xf32>, vector<32x32xf32>, vector<2x32xf32> -> vector<2x32xf32>
    %30 = arith.addf %28, %29 : vector<2x32xf32>
    %31 = math.tanh %30 : vector<2x32xf32>
    %32 = vector.extract_strided_slice %5 {offsets = [12, 0], sizes = [2, 32], strides = [1, 1]} : vector<16x32xf32> to vector<2x32xf32>
    %cst_15 = arith.constant dense<0.000000e+00> : vector<2x32xf32>
    %33 = tpu.matmul %31, %6, %cst_15 {dimension_numbers = #tpu.dot_dimension_numbers<[1], [0], [0], [1], [0, 0, 1, 1], [], []>} : vector<2x32xf32>, vector<32x32xf32>, vector<2x32xf32> -> vector<2x32xf32>
    %34 = arith.addf %32, %33 : vector<2x32xf32>
    %35 = math.tanh %34 : vector<2x32xf32>
    %36 = vector.extract_strided_slice %5 {offsets = [14, 0], sizes = [2, 32], strides = [1, 1]} : vector<16x32xf32> to vector<2x32xf32>
    %cst_16 = arith.constant dense<0.000000e+00> : vector<2x32xf32>
    %37 = tpu.matmul %35, %6, %cst_16 {dimension_numbers = #tpu.dot_dimension_numbers<[1], [0], [0], [1], [0, 0, 1, 1], [], []>} : vector<2x32xf32>, vector<32x32xf32>, vector<2x32xf32> -> vector<2x32xf32>
    %38 = arith.addf %36, %37 : vector<2x32xf32>
    %39 = math.tanh %38 : vector<2x32xf32>
    %40 = tpu.concatenate %11, %15, %19, %23, %27, %31, %35, %39 in 0 : vector<2x32xf32>, vector<2x32xf32>, vector<2x32xf32>, vector<2x32xf32>, vector<2x32xf32>, vector<2x32xf32>, vector<2x32xf32>, vector<2x32xf32> -> vector<16x32xf32>
    %c0_17 = arith.constant 0 : index
    %c0_18 = arith.constant 0 : index
    %41 = vector.load %arg5[%c0_17, %c0_18] : memref<32x128xf32, #tpu.memory_space<vmem>>, vector<32x128xf32>
    %cst_19 = arith.constant dense<0.000000e+00> : vector<16x128xf32>
    %42 = tpu.matmul %40, %41, %cst_19 {dimension_numbers = #tpu.dot_dimension_numbers<[1], [0], [0], [1], [0, 0, 1, 1], [], []>} : vector<16x32xf32>, vector<32x128xf32>, vector<16x128xf32> -> vector<16x128xf32>
    %c0_20 = arith.constant 0 : index
    %c0_21 = arith.constant 0 : index
    %43 = vector.load %arg6[%c0_20, %c0_21] : memref<1x128xf32, #tpu.memory_space<vmem>>, vector<1x128xf32>
    %44 = vector.broadcast %43 : vector<1x128xf32> to vector<16x128xf32>
    %45 = arith.addf %42, %44 : vector<16x128xf32>
    %c0_22 = arith.constant 0 : index
    %c0_23 = arith.constant 0 : index
    %46 = vector.load %arg7[%c0_22, %c0_23] : memref<16x128xf32, #tpu.memory_space<vmem>>, vector<16x128xf32>
    tpu.vector_store %arg7[%c0_22, %c0_23], %45 {strides = array<i32>} : memref<16x128xf32, #tpu.memory_space<vmem>>, vector<16x128xf32>,
    return
  }
}

</mosaic_0001>

<llo_original>
// kernel: tpu_custom_call.1
$region0: #{tpu_custom_call.1}
  #allocation0 [shape = 'u32[]', space=smem, size = 0x4, offset = 0x4, fixed_abs, tag = 'smem constant byte address 0x4 - core index']
  #allocation1 [shape = 'u32[144,128]{1,0:T(1,128)}', space=vmem, size = 0x12000, scoped, tag = 'internal scratch']
  %s0 = inlined_call_operand.vmem [shape: f32[16,1], index: 0, kind: input, shape index: {}]
  %s1 = inlined_call_operand.vmem [shape: f32[2,32], index: 1, kind: input, shape index: {}]
  %s2 = inlined_call_operand.vmem [shape: f32[1,32], index: 2, kind: input, shape index: {}]
  %s3 = inlined_call_operand.hbm [shape: f32[32,32], index: 3, kind: input, shape index: {}]
  %s4 = inlined_call_operand.vmem [shape: f32[1,32], index: 4, kind: input, shape index: {}]
  %s5 = inlined_call_operand.hbm [shape: f32[32,128], index: 5, kind: input, shape index: {}]
  %s6 = inlined_call_operand.vmem [shape: f32[1,128], index: 6, kind: input, shape index: {}]
  %s7 = inlined_call_operand.hbm [shape: f32[16,128], index: 7, kind: output, shape index: {}]
  %s8 = sld [smem:[#allocation0]]
  $region46: #{tpu_custom_call.1} parent=0
    _
  %s10 = ssub.s32 1, %s8
  %s11 = scalar_select 0, %s10, %s8
  $region1: #{tpu_custom_call.1} parent=0
    #allocation2 [shape = 'u8[16384]{0}', space=vmem, size = 0x4000, scoped, tag = 'input window, operand 3, single buffered']
    #allocation3 [shape = 's32[1]{0}', space=sflag, size = 0x4, scoped, tag = 'scoped memory for tpu_custom_call.1']
    #allocation4 [shape = 's32[1]{0}', space=sflag, size = 0x4, scoped, tag = 'scoped memory for tpu_custom_call.1']
    #allocation5 [shape = 'u8[16384]{0}', space=vmem, size = 0x4000, scoped, tag = 'input window, operand 5, single buffered']
    #allocation6 [shape = 's32[1]{0}', space=sflag, size = 0x4, scoped, tag = 'scoped memory for tpu_custom_call.1']
    #allocation7 [shape = 'u8[8192]{0}', space=vmem, size = 0x2000, scoped, tag = 'output window, operand 0, single buffered']
    %12 = vsyncpa [#allocation3], 0
    %13 = vsyncpa [#allocation6], 0
    %14 = vsyncpa [#allocation4], 0
    // Predicated region
    $region2: #{tpu_custom_call.1} parent=1 // pred_check
      _
    $region3: #{tpu_custom_call.1} parent=1 // pred_check_branch
      %16 = sbr.rel (0) target = $region5
    $region4: #{tpu_custom_call.1} parent=1 // pred_region
      _
    $region5: #{tpu_custom_call.1} parent=1 // pred_fallthru
      _
    // Predicated region
    $region6: #{tpu_custom_call.1} parent=1 // pred_check
      _
    $region7: #{tpu_custom_call.1} parent=1 // pred_check_branch
      %18 = sbr.rel (0) target = $region9
    $region8: #{tpu_custom_call.1} parent=1 // pred_region
      _
    $region9: #{tpu_custom_call.1} parent=1 // pred_fallthru
      _
    // Predicated region
    $region10: #{tpu_custom_call.1} parent=1 // pred_check
      _
    $region11: #{tpu_custom_call.1} parent=1 // pred_check_branch
      %20 = sbr.rel (0) target = $region13
    $region12: #{tpu_custom_call.1} parent=1 // pred_region
      _
    $region13: #{tpu_custom_call.1} parent=1 // pred_fallthru
      _
    // Predicated region
    $region14: #{tpu_custom_call.1} parent=1 // pred_check
      _
    $region15: #{tpu_custom_call.1} parent=1 // pred_check_branch
      %22 = sbr.rel (0) target = $region17
    $region16: #{tpu_custom_call.1} parent=1 // pred_region
      %s24 = ssub.s32 512, 512
      %25 = vsyncadd [#allocation3], %s24
      %s26 = sshll.u32 [#allocation2], 4
      %s27 = int_to_ptr.vmem [resolvable:$true] %s26
      %32 = dma.hbm_to_vmem [thread:$0]  %s3, 512, %s27, [#allocation3], 128, 128, 8
    $region17: #{tpu_custom_call.1} parent=1 // pred_fallthru
      _
    // Predicated region
    $region18: #{tpu_custom_call.1} parent=1 // pred_check
      _
    $region19: #{tpu_custom_call.1} parent=1 // pred_check_branch
      %34 = sbr.rel (0) target = $region21
    $region20: #{tpu_custom_call.1} parent=1 // pred_region
      _
    $region21: #{tpu_custom_call.1} parent=1 // pred_fallthru
      _
    // Predicated region
    $region22: #{tpu_custom_call.1} parent=1 // pred_check
      _
    $region23: #{tpu_custom_call.1} parent=1 // pred_check_branch
      %36 = sbr.rel (0) target = $region25
    $region24: #{tpu_custom_call.1} parent=1 // pred_region
      %s38 = ssub.s32 512, 512
      %39 = vsyncadd [#allocation6], %s38
      %s40 = sshll.u32 [#allocation5], 4
      %s41 = int_to_ptr.vmem [resolvable:$true] %s40
      %46 = dma.hbm_to_vmem [thread:$0]  %s5, 512, %s41, [#allocation6], 128, 128, 8
    $region25: #{tpu_custom_call.1} parent=1 // pred_fallthru
      _
    // Predicated region
    $region26: #{tpu_custom_call.1} parent=1 // pred_check
      _
    $region27: #{tpu_custom_call.1} parent=1 // pred_check_branch
      %48 = sbr.rel (0) target = $region29
    $region28: #{tpu_custom_call.1} parent=1 // pred_region
      _
    $region29: #{tpu_custom_call.1} parent=1 // pred_fallthru
      _
    // Predicated region
    $region30: #{tpu_custom_call.1} parent=1 // pred_check
      _
    $region31: #{tpu_custom_call.1} parent=1 // pred_check_branch
      %50 = sbr.rel (0) target = $region33
    $region32: #{tpu_custom_call.1} parent=1 // pred_region
      %51 = dma.done [#allocation3], 512
    $region33: #{tpu_custom_call.1} parent=1 // pred_fallthru
      _
    // Predicated region
    $region34: #{tpu_custom_call.1} parent=1 // pred_check
      _
    $region35: #{tpu_custom_call.1} parent=1 // pred_check_branch
      %53 = sbr.rel (0) target = $region37
    $region36: #{tpu_custom_call.1} parent=1 // pred_region
      %54 = dma.done [#allocation6], 512
    $region37: #{tpu_custom_call.1} parent=1 // pred_fallthru
      _
    %v55 = vld [vmem:[%s0] sm:$0xff]
    %v56 = vld [vmem:[%s0 + $0x8] sm:$0xff]
    %v57 = vld [vmem:[%s2] sm:$0x1]
    %v58 = vld [vmem:[%s4] sm:$0x1]
    %v60 = vlaneseq
    %v61 = vshrl.u32 %v60, 7
    %v62 = vsub.s32 0, %v61
    %v63 = vrot.slane %v58, %v62
    %vm65 = vcmask 7168
    %v67 = vsel %vm65, %v55, 0
    %v70 = vsel %vm65, %v56, 0
    %vm72 = vcmask 1040384
    %v74 = vsel %vm72, %v57, 0
    %76 = vmatprep.subr.mxu0 0.0
    %77 = vmatpush1.msra.mxu0 0.0
    %78 = vmatprep.subr.mxu0 0.0
    %79 = vmatpush1.msra.mxu0 0.0
    %80 = vmatprep.subr.mxu0 0.0
    %81 = vmatpush1.msra.mxu0 0.0
    %82 = vmatprep.subr.mxu0 0.0
    %83 = vmatpush1.msra.mxu0 0.0
    %84 = vmatprep.subr.mxu0 0.0
    %85 = vmatpush1.msra.mxu0 0.0
    %86 = vmatprep.subr.mxu0 0.0
    %87 = vmatpush1.msra.mxu0 0.0
    %88 = vmatprep.subr.mxu0 0.0
    %89 = vmatpush1.msra.mxu0 0.0
    %90 = vmatprep.subr.mxu0 0.0
    %91 = vmatpush1.msra.mxu0 0.0
    %92 = vmatprep.subr.mxu0 0.0
    %93 = vmatpush1.msra.mxu0 0.0
    %94 = vmatprep.subr.mxu0 0.0
    %95 = vmatpush1.msra.mxu0 0.0
    %96 = vmatprep.subr.mxu0 0.0
    %97 = vmatpush1.msra.mxu0 0.0
    %98 = vmatprep.subr.mxu0 0.0
    %99 = vmatpush1.msra.mxu0 0.0
    %100 = vmatprep.subr.mxu0 0.0
    %101 = vmatpush1.msra.mxu0 0.0
    %102 = vmatprep.subr.mxu0 0.0
    %103 = vmatpush1.msra.mxu0 0.0
    %104 = vmatprep.subr.mxu0 0.0
    %105 = vmatpush1.msra.mxu0 0.0
    %106 = vmatprep.subr.mxu0 0.0
    %107 = vmatpush1.msra.mxu0 %v74
    %108 = vmatprep.subr.mxu0 0.0
    %109 = vmatpush2.msra.mxu0 0.0
    %110 = vmatprep.subr.mxu0 0.0
    %111 = vmatpush2.msra.mxu0 0.0
    %112 = vmatprep.subr.mxu0 0.0
    %113 = vmatpush2.msra.mxu0 0.0
    %114 = vmatprep.subr.mxu0 0.0
    %115 = vmatpush2.msra.mxu0 0.0
    %116 = vmatprep.subr.mxu0 0.0
    %117 = vmatpush2.msra.mxu0 0.0
    %118 = vmatprep.subr.mxu0 0.0
    %119 = vmatpush2.msra.mxu0 0.0
    %120 = vmatprep.subr.mxu0 0.0
    %121 = vmatpush2.msra.mxu0 0.0
    %122 = vmatprep.subr.mxu0 0.0
    %123 = vmatpush2.msra.mxu0 0.0
    %124 = vmatprep.subr.mxu0 0.0
    %125 = vmatpush2.msra.mxu0 0.0
    %126 = vmatprep.subr.mxu0 0.0
    %127 = vmatpush2.msra.mxu0 0.0
    %128 = vmatprep.subr.mxu0 0.0
    %129 = vmatpush2.msra.mxu0 0.0
    %130 = vmatprep.subr.mxu0 0.0
    %131 = vmatpush2.msra.mxu0 0.0
    %132 = vmatprep.subr.mxu0 0.0
    %133 = vmatpush2.msra.mxu0 0.0
    %134 = vmatprep.subr.mxu0 0.0
    %135 = vmatpush2.msra.mxu0 0.0
    %136 = vmatprep.subr.mxu0 0.0
    %137 = vmatpush2.msra.mxu0 0.0
    %138 = vmatprep.subr.mxu0 0.0
    %139 = vmatpush2.msra.mxu0 0.0
    %140 = vmatprep.mubr.f32.mxu0 0.0
    %141 = vmatmul.mubr.f32.gmra.mxu0 %v67
    %v142 = vpop.f32.mrf.mxu0
    %v143 = vadd.f32 %v63, %v142
    %v144 = vpop.f32.mrf.mxu0
    %145 = vmatprep.mubr.f32.mxu0 0.0
    %146 = vmatmul.mubr.f32.gmra.mxu0 %v70
    %v147 = vpop.f32.mrf.mxu0
    %v148 = vadd.f32 %v63, %v147
    %v149 = vpop.f32.mrf.mxu0
    %150 = vdwg.mxu0
    %v151 = vld [vmem:[#allocation2] sm:$0xff]
    %v152 = vld [vmem:[#allocation2 + $0x8] sm:$0xff]
    %v153 = vld [vmem:[#allocation2 + $0x10] sm:$0xff]
    %v154 = vld [vmem:[#allocation2 + $0x18] sm:$0xff]
    %v155 = vld [vmem:[%s1] sm:$0x3]
    %vm156 = vcmask 261120
    %v158 = vsel %vm156, %v155, 0
    %160 = vmatprep.subr.mxu0 0.0
    %161 = vmatpush1.msra.mxu0 0.0
    %162 = vmatprep.subr.mxu0 0.0
    %163 = vmatpush1.msra.mxu0 0.0
    %164 = vmatprep.subr.mxu0 0.0
    %165 = vmatpush1.msra.mxu0 0.0
    %166 = vmatprep.subr.mxu0 0.0
    %167 = vmatpush1.msra.mxu0 0.0
    %168 = vmatprep.subr.mxu0 0.0
    %169 = vmatpush1.msra.mxu0 0.0
    %170 = vmatprep.subr.mxu0 0.0
    %171 = vmatpush1.msra.mxu0 0.0
    %172 = vmatprep.subr.mxu0 0.0
    %173 = vmatpush1.msra.mxu0 0.0
    %174 = vmatprep.subr.mxu0 0.0
    %175 = vmatpush1.msra.mxu0 0.0
    %176 = vmatprep.subr.mxu0 0.0
    %177 = vmatpush1.msra.mxu0 0.0
    %178 = vmatprep.subr.mxu0 0.0
    %179 = vmatpush1.msra.mxu0 0.0
    %180 = vmatprep.subr.mxu0 0.0
    %181 = vmatpush1.msra.mxu0 0.0
    %182 = vmatprep.subr.mxu0 0.0
    %183 = vmatpush1.msra.mxu0 0.0
    %184 = vmatprep.subr.mxu0 0.0
    %185 = vmatpush1.msra.mxu0 %v154
    %186 = vmatprep.subr.mxu0 0.0
    %187 = vmatpush1.msra.mxu0 %v153
    %188 = vmatprep.subr.mxu0 0.0
    %189 = vmatpush1.msra.mxu0 %v152
    %190 = vmatprep.subr.mxu0 0.0
    %191 = vmatpush1.msra.mxu0 %v151
    %192 = vmatprep.subr.mxu0 0.0
    %193 = vmatpush2.msra.mxu0 0.0
    %194 = vmatprep.subr.mxu0 0.0
    %195 = vmatpush2.msra.mxu0 0.0
    %196 = vmatprep.subr.mxu0 0.0
    %197 = vmatpush2.msra.mxu0 0.0
    %198 = vmatprep.subr.mxu0 0.0
    %199 = vmatpush2.msra.mxu0 0.0
    %200 = vmatprep.subr.mxu0 0.0
    %201 = vmatpush2.msra.mxu0 0.0
    %202 = vmatprep.subr.mxu0 0.0
    %203 = vmatpush2.msra.mxu0 0.0
    %204 = vmatprep.subr.mxu0 0.0
    %205 = vmatpush2.msra.mxu0 0.0
    %206 = vmatprep.subr.mxu0 0.0
    %207 = vmatpush2.msra.mxu0 0.0
    %208 = vmatprep.subr.mxu0 0.0
    %209 = vmatpush2.msra.mxu0 0.0
    %210 = vmatprep.subr.mxu0 0.0
    %211 = vmatpush2.msra.mxu0 0.0
    %212 = vmatprep.subr.mxu0 0.0
    %213 = vmatpush2.msra.mxu0 0.0
    %214 = vmatprep.subr.mxu0 0.0
    %215 = vmatpush2.msra.mxu0 0.0
    %216 = vmatprep.subr.mxu0 0.0
    %217 = vmatpush2.msra.mxu0 0.0
    %218 = vmatprep.subr.mxu0 0.0
    %219 = vmatpush2.msra.mxu0 0.0
    %220 = vmatprep.subr.mxu0 0.0
    %221 = vmatpush2.msra.mxu0 0.0
    %222 = vmatprep.subr.mxu0 0.0
    %223 = vmatpush2.msra.mxu0 0.0
    %224 = vmatprep.mubr.f32.mxu0 0.0
    %225 = vmatmul.mubr.f32.gmra.mxu0 %v158
    %v226 = vpop.f32.mrf.mxu0
    %v227 = vadd.f32 0.0, %v226
    %v228 = vpop.f32.mrf.mxu0
    %229 = vdwg.mxu0
    %v230 = vadd.f32 %v143, %v227
    %v231 = vtanh.pop %v230
    %v233 = vsel %vm156, %v231, 0
    %235 = vmatprep.subr.mxu0 0.0
    %236 = vmatpush1.msra.mxu0 0.0
    %237 = vmatprep.subr.mxu0 0.0
    %238 = vmatpush1.msra.mxu0 0.0
    %239 = vmatprep.subr.mxu0 0.0
    %240 = vmatpush1.msra.mxu0 0.0
    %241 = vmatprep.subr.mxu0 0.0
    %242 = vmatpush1.msra.mxu0 0.0
    %243 = vmatprep.subr.mxu0 0.0
    %244 = vmatpush1.msra.mxu0 0.0
    %245 = vmatprep.subr.mxu0 0.0
    %246 = vmatpush1.msra.mxu0 0.0
    %247 = vmatprep.subr.mxu0 0.0
    %248 = vmatpush1.msra.mxu0 0.0
    %249 = vmatprep.subr.mxu0 0.0
    %250 = vmatpush1.msra.mxu0 0.0
    %251 = vmatprep.subr.mxu0 0.0
    %252 = vmatpush1.msra.mxu0 0.0
    %253 = vmatprep.subr.mxu0 0.0
    %254 = vmatpush1.msra.mxu0 0.0
    %255 = vmatprep.subr.mxu0 0.0
    %256 = vmatpush1.msra.mxu0 0.0
    %257 = vmatprep.subr.mxu0 0.0
    %258 = vmatpush1.msra.mxu0 0.0
    %259 = vmatprep.subr.mxu0 0.0
    %260 = vmatpush1.msra.mxu0 %v154
    %261 = vmatprep.subr.mxu0 0.0
    %262 = vmatpush1.msra.mxu0 %v153
    %263 = vmatprep.subr.mxu0 0.0
    %264 = vmatpush1.msra.mxu0 %v152
    %265 = vmatprep.subr.mxu0 0.0
    %266 = vmatpush1.msra.mxu0 %v151
    %267 = vmatprep.subr.mxu0 0.0
    %268 = vmatpush2.msra.mxu0 0.0
    %269 = vmatprep.subr.mxu0 0.0
    %270 = vmatpush2.msra.mxu0 0.0
    %271 = vmatprep.subr.mxu0 0.0
    %272 = vmatpush2.msra.mxu0 0.0
    %273 = vmatprep.subr.mxu0 0.0
    %274 = vmatpush2.msra.mxu0 0.0
    %275 = vmatprep.subr.mxu0 0.0
    %276 = vmatpush2.msra.mxu0 0.0
    %277 = vmatprep.subr.mxu0 0.0
    %278 = vmatpush2.msra.mxu0 0.0
    %279 = vmatprep.subr.mxu0 0.0
    %280 = vmatpush2.msra.mxu0 0.0
    %281 = vmatprep.subr.mxu0 0.0
    %282 = vmatpush2.msra.mxu0 0.0
    %283 = vmatprep.subr.mxu0 0.0
    %284 = vmatpush2.msra.mxu0 0.0
    %285 = vmatprep.subr.mxu0 0.0
    %286 = vmatpush2.msra.mxu0 0.0
    %287 = vmatprep.subr.mxu0 0.0
    %288 = vmatpush2.msra.mxu0 0.0
    %289 = vmatprep.subr.mxu0 0.0
    %290 = vmatpush2.msra.mxu0 0.0
    %291 = vmatprep.subr.mxu0 0.0
    %292 = vmatpush2.msra.mxu0 0.0
    %293 = vmatprep.subr.mxu0 0.0
    %294 = vmatpush2.msra.mxu0 0.0
    %295 = vmatprep.subr.mxu0 0.0
    %296 = vmatpush2.msra.mxu0 0.0
    %297 = vmatprep.subr.mxu0 0.0
    %298 = vmatpush2.msra.mxu0 0.0
    %299 = vmatprep.mubr.f32.mxu0 0.0
    %300 = vmatmul.mubr.f32.gmra.mxu0 %v233
    %v301 = vpop.f32.mrf.mxu0
    %v302 = vadd.f32 0.0, %v301
    %v303 = vpop.f32.mrf.mxu0
    %304 = vdwg.mxu0
    %v306 = vrot.slane %v302, 6
    %v308 = vadd.f32 %v143, %v306
    %v309 = vtanh.pop %v308
    %v311 = vrot.slane %v309, 2
    %v312 = vsel %vm156, %v311, 0
    %314 = vmatprep.subr.mxu0 0.0
    %315 = vmatpush1.msra.mxu0 0.0
    %316 = vmatprep.subr.mxu0 0.0
    %317 = vmatpush1.msra.mxu0 0.0
    %318 = vmatprep.subr.mxu0 0.0
    %319 = vmatpush1.msra.mxu0 0.0
    %320 = vmatprep.subr.mxu0 0.0
    %321 = vmatpush1.msra.mxu0 0.0
    %322 = vmatprep.subr.mxu0 0.0
    %323 = vmatpush1.msra.mxu0 0.0
    %324 = vmatprep.subr.mxu0 0.0
    %325 = vmatpush1.msra.mxu0 0.0
    %326 = vmatprep.subr.mxu0 0.0
    %327 = vmatpush1.msra.mxu0 0.0
    %328 = vmatprep.subr.mxu0 0.0
    %329 = vmatpush1.msra.mxu0 0.0
    %330 = vmatprep.subr.mxu0 0.0
    %331 = vmatpush1.msra.mxu0 0.0
    %332 = vmatprep.subr.mxu0 0.0
    %333 = vmatpush1.msra.mxu0 0.0
    %334 = vmatprep.subr.mxu0 0.0
    %335 = vmatpush1.msra.mxu0 0.0
    %336 = vmatprep.subr.mxu0 0.0
    %337 = vmatpush1.msra.mxu0 0.0
    %338 = vmatprep.subr.mxu0 0.0
    %339 = vmatpush1.msra.mxu0 %v154
    %340 = vmatprep.subr.mxu0 0.0
    %341 = vmatpush1.msra.mxu0 %v153
    %342 = vmatprep.subr.mxu0 0.0
    %343 = vmatpush1.msra.mxu0 %v152
    %344 = vmatprep.subr.mxu0 0.0
    %345 = vmatpush1.msra.mxu0 %v151
    %346 = vmatprep.subr.mxu0 0.0
    %347 = vmatpush2.msra.mxu0 0.0
    %348 = vmatprep.subr.mxu0 0.0
    %349 = vmatpush2.msra.mxu0 0.0
    %350 = vmatprep.subr.mxu0 0.0
    %351 = vmatpush2.msra.mxu0 0.0
    %352 = vmatprep.subr.mxu0 0.0
    %353 = vmatpush2.msra.mxu0 0.0
    %354 = vmatprep.subr.mxu0 0.0
    %355 = vmatpush2.msra.mxu0 0.0
    %356 = vmatprep.subr.mxu0 0.0
    %357 = vmatpush2.msra.mxu0 0.0
    %358 = vmatprep.subr.mxu0 0.0
    %359 = vmatpush2.msra.mxu0 0.0
    %360 = vmatprep.subr.mxu0 0.0
    %361 = vmatpush2.msra.mxu0 0.0
    %362 = vmatprep.subr.mxu0 0.0
    %363 = vmatpush2.msra.mxu0 0.0
    %364 = vmatprep.subr.mxu0 0.0
    %365 = vmatpush2.msra.mxu0 0.0
    %366 = vmatprep.subr.mxu0 0.0
    %367 = vmatpush2.msra.mxu0 0.0
    %368 = vmatprep.subr.mxu0 0.0
    %369 = vmatpush2.msra.mxu0 0.0
    %370 = vmatprep.subr.mxu0 0.0
    %371 = vmatpush2.msra.mxu0 0.0
    %372 = vmatprep.subr.mxu0 0.0
    %373 = vmatpush2.msra.mxu0 0.0
    %374 = vmatprep.subr.mxu0 0.0
    %375 = vmatpush2.msra.mxu0 0.0
    %376 = vmatprep.subr.mxu0 0.0
    %377 = vmatpush2.msra.mxu0 0.0
    %378 = vmatprep.mubr.f32.mxu0 0.0
    %379 = vmatmul.mubr.f32.gmra.mxu0 %v312
    %v380 = vpop.f32.mrf.mxu0
    %v381 = vadd.f32 0.0, %v380
    %v382 = vpop.f32.mrf.mxu0
    %383 = vdwg.mxu0
    %v385 = vrot.slane %v381, 4
    %v387 = vadd.f32 %v143, %v385
    %v388 = vtanh.pop %v387
    %v390 = vrot.slane %v388, 4
    %v391 = vsel %vm156, %v390, 0
    %393 = vmatprep.subr.mxu0 0.0
    %394 = vmatpush1.msra.mxu0 0.0
    %395 = vmatprep.subr.mxu0 0.0
    %396 = vmatpush1.msra.mxu0 0.0
    %397 = vmatprep.subr.mxu0 0.0
    %398 = vmatpush1.msra.mxu0 0.0
    %399 = vmatprep.subr.mxu0 0.0
    %400 = vmatpush1.msra.mxu0 0.0
    %401 = vmatprep.subr.mxu0 0.0
    %402 = vmatpush1.msra.mxu0 0.0
    %403 = vmatprep.subr.mxu0 0.0
    %404 = vmatpush1.msra.mxu0 0.0
    %405 = vmatprep.subr.mxu0 0.0
    %406 = vmatpush1.msra.mxu0 0.0
    %407 = vmatprep.subr.mxu0 0.0
    %408 = vmatpush1.msra.mxu0 0.0
    %409 = vmatprep.subr.mxu0 0.0
    %410 = vmatpush1.msra.mxu0 0.0
    %411 = vmatprep.subr.mxu0 0.0
    %412 = vmatpush1.msra.mxu0 0.0
    %413 = vmatprep.subr.mxu0 0.0
    %414 = vmatpush1.msra.mxu0 0.0
    %415 = vmatprep.subr.mxu0 0.0
    %416 = vmatpush1.msra.mxu0 0.0
    %417 = vmatprep.subr.mxu0 0.0
    %418 = vmatpush1.msra.mxu0 %v154
    %419 = vmatprep.subr.mxu0 0.0
    %420 = vmatpush1.msra.mxu0 %v153
    %421 = vmatprep.subr.mxu0 0.0
    %422 = vmatpush1.msra.mxu0 %v152
    %423 = vmatprep.subr.mxu0 0.0
    %424 = vmatpush1.msra.mxu0 %v151
    %425 = vmatprep.subr.mxu0 0.0
    %426 = vmatpush2.msra.mxu0 0.0
    %427 = vmatprep.subr.mxu0 0.0
    %428 = vmatpush2.msra.mxu0 0.0
    %429 = vmatprep.subr.mxu0 0.0
    %430 = vmatpush2.msra.mxu0 0.0
    %431 = vmatprep.subr.mxu0 0.0
    %432 = vmatpush2.msra.mxu0 0.0
    %433 = vmatprep.subr.mxu0 0.0
    %434 = vmatpush2.msra.mxu0 0.0
    %435 = vmatprep.subr.mxu0 0.0
    %436 = vmatpush2.msra.mxu0 0.0
    %437 = vmatprep.subr.mxu0 0.0
    %438 = vmatpush2.msra.mxu0 0.0
    %439 = vmatprep.subr.mxu0 0.0
    %440 = vmatpush2.msra.mxu0 0.0
    %441 = vmatprep.subr.mxu0 0.0
    %442 = vmatpush2.msra.mxu0 0.0
    %443 = vmatprep.subr.mxu0 0.0
    %444 = vmatpush2.msra.mxu0 0.0
    %445 = vmatprep.subr.mxu0 0.0
    %446 = vmatpush2.msra.mxu0 0.0
    %447 = vmatprep.subr.mxu0 0.0
    %448 = vmatpush2.msra.mxu0 0.0
    %449 = vmatprep.subr.mxu0 0.0
    %450 = vmatpush2.msra.mxu0 0.0
    %451 = vmatprep.subr.mxu0 0.0
    %452 = vmatpush2.msra.mxu0 0.0
    %453 = vmatprep.subr.mxu0 0.0
    %454 = vmatpush2.msra.mxu0 0.0
    %455 = vmatprep.subr.mxu0 0.0
    %456 = vmatpush2.msra.mxu0 0.0
    %457 = vmatprep.mubr.f32.mxu0 0.0
    %458 = vmatmul.mubr.f32.gmra.mxu0 %v391
    %v459 = vpop.f32.mrf.mxu0
    %v460 = vadd.f32 0.0, %v459
    %v461 = vpop.f32.mrf.mxu0
    %462 = vdwg.mxu0
    %v464 = vrot.slane %v460, 2
    %v466 = vadd.f32 %v143, %v464
    %v467 = vtanh.pop %v466
    %v469 = vrot.slane %v467, 6
    %v470 = vsel %vm156, %v469, 0
    %472 = vmatprep.subr.mxu0 0.0
    %473 = vmatpush1.msra.mxu0 0.0
    %474 = vmatprep.subr.mxu0 0.0
    %475 = vmatpush1.msra.mxu0 0.0
    %476 = vmatprep.subr.mxu0 0.0
    %477 = vmatpush1.msra.mxu0 0.0
    %478 = vmatprep.subr.mxu0 0.0
    %479 = vmatpush1.msra.mxu0 0.0
    %480 = vmatprep.subr.mxu0 0.0
    %481 = vmatpush1.msra.mxu0 0.0
    %482 = vmatprep.subr.mxu0 0.0
    %483 = vmatpush1.msra.mxu0 0.0
    %484 = vmatprep.subr.mxu0 0.0
    %485 = vmatpush1.msra.mxu0 0.0
    %486 = vmatprep.subr.mxu0 0.0
    %487 = vmatpush1.msra.mxu0 0.0
    %488 = vmatprep.subr.mxu0 0.0
    %489 = vmatpush1.msra.mxu0 0.0
    %490 = vmatprep.subr.mxu0 0.0
    %491 = vmatpush1.msra.mxu0 0.0
    %492 = vmatprep.subr.mxu0 0.0
    %493 = vmatpush1.msra.mxu0 0.0
    %494 = vmatprep.subr.mxu0 0.0
    %495 = vmatpush1.msra.mxu0 0.0
    %496 = vmatprep.subr.mxu0 0.0
    %497 = vmatpush1.msra.mxu0 %v154
    %498 = vmatprep.subr.mxu0 0.0
    %499 = vmatpush1.msra.mxu0 %v153
    %500 = vmatprep.subr.mxu0 0.0
    %501 = vmatpush1.msra.mxu0 %v152
    %502 = vmatprep.subr.mxu0 0.0
    %503 = vmatpush1.msra.mxu0 %v151
    %504 = vmatprep.subr.mxu0 0.0
    %505 = vmatpush2.msra.mxu0 0.0
    %506 = vmatprep.subr.mxu0 0.0
    %507 = vmatpush2.msra.mxu0 0.0
    %508 = vmatprep.subr.mxu0 0.0
    %509 = vmatpush2.msra.mxu0 0.0
    %510 = vmatprep.subr.mxu0 0.0
    %511 = vmatpush2.msra.mxu0 0.0
    %512 = vmatprep.subr.mxu0 0.0
    %513 = vmatpush2.msra.mxu0 0.0
    %514 = vmatprep.subr.mxu0 0.0
    %515 = vmatpush2.msra.mxu0 0.0
    %516 = vmatprep.subr.mxu0 0.0
    %517 = vmatpush2.msra.mxu0 0.0
    %518 = vmatprep.subr.mxu0 0.0
    %519 = vmatpush2.msra.mxu0 0.0
    %520 = vmatprep.subr.mxu0 0.0
    %521 = vmatpush2.msra.mxu0 0.0
    %522 = vmatprep.subr.mxu0 0.0
    %523 = vmatpush2.msra.mxu0 0.0
    %524 = vmatprep.subr.mxu0 0.0
    %525 = vmatpush2.msra.mxu0 0.0
    %526 = vmatprep.subr.mxu0 0.0
    %527 = vmatpush2.msra.mxu0 0.0
    %528 = vmatprep.subr.mxu0 0.0
    %529 = vmatpush2.msra.mxu0 0.0
    %530 = vmatprep.subr.mxu0 0.0
    %531 = vmatpush2.msra.mxu0 0.0
    %532 = vmatprep.subr.mxu0 0.0
    %533 = vmatpush2.msra.mxu0 0.0
    %534 = vmatprep.subr.mxu0 0.0
    %535 = vmatpush2.msra.mxu0 0.0
    %536 = vmatprep.mubr.f32.mxu0 0.0
    %537 = vmatmul.mubr.f32.gmra.mxu0 %v470
    %v538 = vpop.f32.mrf.mxu0
    %v539 = vadd.f32 0.0, %v538
    %v540 = vpop.f32.mrf.mxu0
    %541 = vdwg.mxu0
    %v542 = vadd.f32 %v148, %v539
    %v543 = vtanh.pop %v542
    %v545 = vsel %vm156, %v543, 0
    %547 = vmatprep.subr.mxu0 0.0
    %548 = vmatpush1.msra.mxu0 0.0
    %549 = vmatprep.subr.mxu0 0.0
    %550 = vmatpush1.msra.mxu0 0.0
    %551 = vmatprep.subr.mxu0 0.0
    %552 = vmatpush1.msra.mxu0 0.0
    %553 = vmatprep.subr.mxu0 0.0
    %554 = vmatpush1.msra.mxu0 0.0
    %555 = vmatprep.subr.mxu0 0.0
    %556 = vmatpush1.msra.mxu0 0.0
    %557 = vmatprep.subr.mxu0 0.0
    %558 = vmatpush1.msra.mxu0 0.0
    %559 = vmatprep.subr.mxu0 0.0
    %560 = vmatpush1.msra.mxu0 0.0
    %561 = vmatprep.subr.mxu0 0.0
    %562 = vmatpush1.msra.mxu0 0.0
    %563 = vmatprep.subr.mxu0 0.0
    %564 = vmatpush1.msra.mxu0 0.0
    %565 = vmatprep.subr.mxu0 0.0
    %566 = vmatpush1.msra.mxu0 0.0
    %567 = vmatprep.subr.mxu0 0.0
    %568 = vmatpush1.msra.mxu0 0.0
    %569 = vmatprep.subr.mxu0 0.0
    %570 = vmatpush1.msra.mxu0 0.0
    %571 = vmatprep.subr.mxu0 0.0
    %572 = vmatpush1.msra.mxu0 %v154
    %573 = vmatprep.subr.mxu0 0.0
    %574 = vmatpush1.msra.mxu0 %v153
    %575 = vmatprep.subr.mxu0 0.0
    %576 = vmatpush1.msra.mxu0 %v152
    %577 = vmatprep.subr.mxu0 0.0
    %578 = vmatpush1.msra.mxu0 %v151
    %579 = vmatprep.subr.mxu0 0.0
    %580 = vmatpush2.msra.mxu0 0.0
    %581 = vmatprep.subr.mxu0 0.0
    %582 = vmatpush2.msra.mxu0 0.0
    %583 = vmatprep.subr.mxu0 0.0
    %584 = vmatpush2.msra.mxu0 0.0
    %585 = vmatprep.subr.mxu0 0.0
    %586 = vmatpush2.msra.mxu0 0.0
    %587 = vmatprep.subr.mxu0 0.0
    %588 = vmatpush2.msra.mxu0 0.0
    %589 = vmatprep.subr.mxu0 0.0
    %590 = vmatpush2.msra.mxu0 0.0
    %591 = vmatprep.subr.mxu0 0.0
    %592 = vmatpush2.msra.mxu0 0.0
    %593 = vmatprep.subr.mxu0 0.0
    %594 = vmatpush2.msra.mxu0 0.0
    %595 = vmatprep.subr.mxu0 0.0
    %596 = vmatpush2.msra.mxu0 0.0
    %597 = vmatprep.subr.mxu0 0.0
    %598 = vmatpush2.msra.mxu0 0.0
    %599 = vmatprep.subr.mxu0 0.0
    %600 = vmatpush2.msra.mxu0 0.0
    %601 = vmatprep.subr.mxu0 0.0
    %602 = vmatpush2.msra.mxu0 0.0
    %603 = vmatprep.subr.mxu0 0.0
    %604 = vmatpush2.msra.mxu0 0.0
    %605 = vmatprep.subr.mxu0 0.0
    %606 = vmatpush2.msra.mxu0 0.0
    %607 = vmatprep.subr.mxu0 0.0
    %608 = vmatpush2.msra.mxu0 0.0
    %609 = vmatprep.subr.mxu0 0.0
    %610 = vmatpush2.msra.mxu0 0.0
    %611 = vmatprep.mubr.f32.mxu0 0.0
    %612 = vmatmul.mubr.f32.gmra.mxu0 %v545
    %v613 = vpop.f32.mrf.mxu0
    %v614 = vadd.f32 0.0, %v613
    %v615 = vpop.f32.mrf.mxu0
    %616 = vdwg.mxu0
    %v618 = vrot.slane %v614, 6
    %v620 = vadd.f32 %v148, %v618
    %v621 = vtanh.pop %v620
    %v623 = vrot.slane %v621, 2
    %v624 = vsel %vm156, %v623, 0
    %626 = vmatprep.subr.mxu0 0.0
    %627 = vmatpush1.msra.mxu0 0.0
    %628 = vmatprep.subr.mxu0 0.0
    %629 = vmatpush1.msra.mxu0 0.0
    %630 = vmatprep.subr.mxu0 0.0
    %631 = vmatpush1.msra.mxu0 0.0
    %632 = vmatprep.subr.mxu0 0.0
    %633 = vmatpush1.msra.mxu0 0.0
    %634 = vmatprep.subr.mxu0 0.0
    %635 = vmatpush1.msra.mxu0 0.0
    %636 = vmatprep.subr.mxu0 0.0
    %637 = vmatpush1.msra.mxu0 0.0
    %638 = vmatprep.subr.mxu0 0.0
    %639 = vmatpush1.msra.mxu0 0.0
    %640 = vmatprep.subr.mxu0 0.0
    %641 = vmatpush1.msra.mxu0 0.0
    %642 = vmatprep.subr.mxu0 0.0
    %643 = vmatpush1.msra.mxu0 0.0
    %644 = vmatprep.subr.mxu0 0.0
    %645 = vmatpush1.msra.mxu0 0.0
    %646 = vmatprep.subr.mxu0 0.0
    %647 = vmatpush1.msra.mxu0 0.0
    %648 = vmatprep.subr.mxu0 0.0
    %649 = vmatpush1.msra.mxu0 0.0
    %650 = vmatprep.subr.mxu0 0.0
    %651 = vmatpush1.msra.mxu0 %v154
    %652 = vmatprep.subr.mxu0 0.0
    %653 = vmatpush1.msra.mxu0 %v153
    %654 = vmatprep.subr.mxu0 0.0
    %655 = vmatpush1.msra.mxu0 %v152
    %656 = vmatprep.subr.mxu0 0.0
    %657 = vmatpush1.msra.mxu0 %v151
    %658 = vmatprep.subr.mxu0 0.0
    %659 = vmatpush2.msra.mxu0 0.0
    %660 = vmatprep.subr.mxu0 0.0
    %661 = vmatpush2.msra.mxu0 0.0
    %662 = vmatprep.subr.mxu0 0.0
    %663 = vmatpush2.msra.mxu0 0.0
    %664 = vmatprep.subr.mxu0 0.0
    %665 = vmatpush2.msra.mxu0 0.0
    %666 = vmatprep.subr.mxu0 0.0
    %667 = vmatpush2.msra.mxu0 0.0
    %668 = vmatprep.subr.mxu0 0.0
    %669 = vmatpush2.msra.mxu0 0.0
    %670 = vmatprep.subr.mxu0 0.0
    %671 = vmatpush2.msra.mxu0 0.0
    %672 = vmatprep.subr.mxu0 0.0
    %673 = vmatpush2.msra.mxu0 0.0
    %674 = vmatprep.subr.mxu0 0.0
    %675 = vmatpush2.msra.mxu0 0.0
    %676 = vmatprep.subr.mxu0 0.0
    %677 = vmatpush2.msra.mxu0 0.0
    %678 = vmatprep.subr.mxu0 0.0
    %679 = vmatpush2.msra.mxu0 0.0
    %680 = vmatprep.subr.mxu0 0.0
    %681 = vmatpush2.msra.mxu0 0.0
    %682 = vmatprep.subr.mxu0 0.0
    %683 = vmatpush2.msra.mxu0 0.0
    %684 = vmatprep.subr.mxu0 0.0
    %685 = vmatpush2.msra.mxu0 0.0
    %686 = vmatprep.subr.mxu0 0.0
    %687 = vmatpush2.msra.mxu0 0.0
    %688 = vmatprep.subr.mxu0 0.0
    %689 = vmatpush2.msra.mxu0 0.0
    %690 = vmatprep.mubr.f32.mxu0 0.0
    %691 = vmatmul.mubr.f32.gmra.mxu0 %v624
    %v692 = vpop.f32.mrf.mxu0
    %v693 = vadd.f32 0.0, %v692
    %v694 = vpop.f32.mrf.mxu0
    %695 = vdwg.mxu0
    %v697 = vrot.slane %v693, 4
    %v699 = vadd.f32 %v148, %v697
    %v700 = vtanh.pop %v699
    %v702 = vrot.slane %v700, 4
    %v703 = vsel %vm156, %v702, 0
    %705 = vmatprep.subr.mxu0 0.0
    %706 = vmatpush1.msra.mxu0 0.0
    %707 = vmatprep.subr.mxu0 0.0
    %708 = vmatpush1.msra.mxu0 0.0
    %709 = vmatprep.subr.mxu0 0.0
    %710 = vmatpush1.msra.mxu0 0.0
    %711 = vmatprep.subr.mxu0 0.0
    %712 = vmatpush1.msra.mxu0 0.0
    %713 = vmatprep.subr.mxu0 0.0
    %714 = vmatpush1.msra.mxu0 0.0
    %715 = vmatprep.subr.mxu0 0.0
    %716 = vmatpush1.msra.mxu0 0.0
    %717 = vmatprep.subr.mxu0 0.0
    %718 = vmatpush1.msra.mxu0 0.0
    %719 = vmatprep.subr.mxu0 0.0
    %720 = vmatpush1.msra.mxu0 0.0
    %721 = vmatprep.subr.mxu0 0.0
    %722 = vmatpush1.msra.mxu0 0.0
    %723 = vmatprep.subr.mxu0 0.0
    %724 = vmatpush1.msra.mxu0 0.0
    %725 = vmatprep.subr.mxu0 0.0
    %726 = vmatpush1.msra.mxu0 0.0
    %727 = vmatprep.subr.mxu0 0.0
    %728 = vmatpush1.msra.mxu0 0.0
    %729 = vmatprep.subr.mxu0 0.0
    %730 = vmatpush1.msra.mxu0 %v154
    %731 = vmatprep.subr.mxu0 0.0
    %732 = vmatpush1.msra.mxu0 %v153
    %733 = vmatprep.subr.mxu0 0.0
    %734 = vmatpush1.msra.mxu0 %v152
    %735 = vmatprep.subr.mxu0 0.0
    %736 = vmatpush1.msra.mxu0 %v151
    %737 = vmatprep.subr.mxu0 0.0
    %738 = vmatpush2.msra.mxu0 0.0
    %739 = vmatprep.subr.mxu0 0.0
    %740 = vmatpush2.msra.mxu0 0.0
    %741 = vmatprep.subr.mxu0 0.0
    %742 = vmatpush2.msra.mxu0 0.0
    %743 = vmatprep.subr.mxu0 0.0
    %744 = vmatpush2.msra.mxu0 0.0
    %745 = vmatprep.subr.mxu0 0.0
    %746 = vmatpush2.msra.mxu0 0.0
    %747 = vmatprep.subr.mxu0 0.0
    %748 = vmatpush2.msra.mxu0 0.0
    %749 = vmatprep.subr.mxu0 0.0
    %750 = vmatpush2.msra.mxu0 0.0
    %751 = vmatprep.subr.mxu0 0.0
    %752 = vmatpush2.msra.mxu0 0.0
    %753 = vmatprep.subr.mxu0 0.0
    %754 = vmatpush2.msra.mxu0 0.0
    %755 = vmatprep.subr.mxu0 0.0
    %756 = vmatpush2.msra.mxu0 0.0
    %757 = vmatprep.subr.mxu0 0.0
    %758 = vmatpush2.msra.mxu0 0.0
    %759 = vmatprep.subr.mxu0 0.0
    %760 = vmatpush2.msra.mxu0 0.0
    %761 = vmatprep.subr.mxu0 0.0
    %762 = vmatpush2.msra.mxu0 0.0
    %763 = vmatprep.subr.mxu0 0.0
    %764 = vmatpush2.msra.mxu0 0.0
    %765 = vmatprep.subr.mxu0 0.0
    %766 = vmatpush2.msra.mxu0 0.0
    %767 = vmatprep.subr.mxu0 0.0
    %768 = vmatpush2.msra.mxu0 0.0
    %769 = vmatprep.mubr.f32.mxu0 0.0
    %770 = vmatmul.mubr.f32.gmra.mxu0 %v703
    %v771 = vpop.f32.mrf.mxu0
    %v772 = vadd.f32 0.0, %v771
    %v773 = vpop.f32.mrf.mxu0
    %774 = vdwg.mxu0
    %v776 = vrot.slane %v772, 2
    %v778 = vadd.f32 %v148, %v776
    %v779 = vtanh.pop %v778
    %vm780 = vcmask 1041408
    %v781 = vsel %vm780, %v231, %v309
    %vm782 = vcmask 1043456
    %v783 = vsel %vm782, %v781, %v388
    %vm784 = vcmask 1045504
    %v785 = vsel %vm784, %v783, %v467
    %v786 = vsel %vm780, %v543, %v621
    %v787 = vsel %vm782, %v786, %v700
    %v788 = vsel %vm784, %v787, %v779
    %v789 = vld [vmem:[#allocation5] sm:$0xff]
    %v790 = vld [vmem:[#allocation5 + $0x8] sm:$0xff]
    %v791 = vld [vmem:[#allocation5 + $0x10] sm:$0xff]
    %v792 = vld [vmem:[#allocation5 + $0x18] sm:$0xff]
    %v793 = vld [vmem:[%s6] sm:$0x1]
    %v795 = vlaneseq
    %v796 = vshrl.u32 %v795, 7
    %v797 = vsub.s32 0, %v796
    %v798 = vrot.slane %v793, %v797
    %v801 = vsel %vm156, %v785, 0
    %v804 = vsel %vm156, %v788, 0
    %806 = vmatprep.subr.mxu0 0.0
    %807 = vmatpush1.msra.mxu0 0.0
    %808 = vmatprep.subr.mxu0 0.0
    %809 = vmatpush1.msra.mxu0 0.0
    %810 = vmatprep.subr.mxu0 0.0
    %811 = vmatpush1.msra.mxu0 0.0
    %812 = vmatprep.subr.mxu0 0.0
    %813 = vmatpush1.msra.mxu0 0.0
    %814 = vmatprep.subr.mxu0 0.0
    %815 = vmatpush1.msra.mxu0 0.0
    %816 = vmatprep.subr.mxu0 0.0
    %817 = vmatpush1.msra.mxu0 0.0
    %818 = vmatprep.subr.mxu0 0.0
    %819 = vmatpush1.msra.mxu0 0.0
    %820 = vmatprep.subr.mxu0 0.0
    %821 = vmatpush1.msra.mxu0 0.0
    %822 = vmatprep.subr.mxu0 0.0
    %823 = vmatpush1.msra.mxu0 0.0
    %824 = vmatprep.subr.mxu0 0.0
    %825 = vmatpush1.msra.mxu0 0.0
    %826 = vmatprep.subr.mxu0 0.0
    %827 = vmatpush1.msra.mxu0 0.0
    %828 = vmatprep.subr.mxu0 0.0
    %829 = vmatpush1.msra.mxu0 0.0
    %830 = vmatprep.subr.mxu0 0.0
    %831 = vmatpush1.msra.mxu0 %v792
    %832 = vmatprep.subr.mxu0 0.0
    %833 = vmatpush1.msra.mxu0 %v791
    %834 = vmatprep.subr.mxu0 0.0
    %835 = vmatpush1.msra.mxu0 %v790
    %836 = vmatprep.subr.mxu0 0.0
    %837 = vmatpush1.msra.mxu0 %v789
    %838 = vmatprep.subr.mxu0 0.0
    %839 = vmatpush2.msra.mxu0 0.0
    %840 = vmatprep.subr.mxu0 0.0
    %841 = vmatpush2.msra.mxu0 0.0
    %842 = vmatprep.subr.mxu0 0.0
    %843 = vmatpush2.msra.mxu0 0.0
    %844 = vmatprep.subr.mxu0 0.0
    %845 = vmatpush2.msra.mxu0 0.0
    %846 = vmatprep.subr.mxu0 0.0
    %847 = vmatpush2.msra.mxu0 0.0
    %848 = vmatprep.subr.mxu0 0.0
    %849 = vmatpush2.msra.mxu0 0.0
    %850 = vmatprep.subr.mxu0 0.0
    %851 = vmatpush2.msra.mxu0 0.0
    %852 = vmatprep.subr.mxu0 0.0
    %853 = vmatpush2.msra.mxu0 0.0
    %854 = vmatprep.subr.mxu0 0.0
    %855 = vmatpush2.msra.mxu0 0.0
    %856 = vmatprep.subr.mxu0 0.0
    %857 = vmatpush2.msra.mxu0 0.0
    %858 = vmatprep.subr.mxu0 0.0
    %859 = vmatpush2.msra.mxu0 0.0
    %860 = vmatprep.subr.mxu0 0.0
    %861 = vmatpush2.msra.mxu0 0.0
    %862 = vmatprep.subr.mxu0 0.0
    %863 = vmatpush2.msra.mxu0 0.0
    %864 = vmatprep.subr.mxu0 0.0
    %865 = vmatpush2.msra.mxu0 0.0
    %866 = vmatprep.subr.mxu0 0.0
    %867 = vmatpush2.msra.mxu0 0.0
    %868 = vmatprep.subr.mxu0 0.0
    %869 = vmatpush2.msra.mxu0 0.0
    %870 = vmatprep.mubr.f32.mxu0 0.0
    %871 = vmatmul.mubr.f32.gmra.mxu0 %v801
    %v872 = vpop.f32.mrf.mxu0
    %v873 = vadd.f32 %v798, %v872
    %v874 = vpop.f32.mrf.mxu0
    %875 = vmatprep.mubr.f32.mxu0 0.0
    %876 = vmatmul.mubr.f32.gmra.mxu0 %v804
    %v877 = vpop.f32.mrf.mxu0
    %v878 = vadd.f32 %v798, %v877
    %v879 = vpop.f32.mrf.mxu0
    %880 = vdwg.mxu0
    %881 = vst [vmem:[#allocation7] sm:$0xff] %v873
    %882 = vst [vmem:[#allocation7 + $0x8] sm:$0xff] %v878
    // Predicated region
    $region38: #{tpu_custom_call.1} parent=1 // pred_check
      _
    $region39: #{tpu_custom_call.1} parent=1 // pred_check_branch
      %884 = sbr.rel (0) target = $region41
    $region40: #{tpu_custom_call.1} parent=1 // pred_region
      %s886 = ssub.s32 256, 256
      %887 = vsyncadd [#allocation4], %s886
      %s888 = sshll.u32 [#allocation7], 4
      %s889 = int_to_ptr.vmem [resolvable:$true] %s888
      %894 = dma.vmem_to_hbm [thread:$0]  %s889, 256, %s7, [#allocation4], 128, 128, 8
    $region41: #{tpu_custom_call.1} parent=1 // pred_fallthru
      _
    // Predicated region
    $region42: #{tpu_custom_call.1} parent=1 // pred_check
      _
    $region43: #{tpu_custom_call.1} parent=1 // pred_check_branch
      %896 = sbr.rel (0) target = $region45
    $region44: #{tpu_custom_call.1} parent=1 // pred_region
      %897 = dma.done [#allocation4], 256
    $region45: #{tpu_custom_call.1} parent=1 // pred_fallthru
      _
    %898 = vsyncpa [#allocation3], 1
    %899 = vsyncpa [#allocation6], 1
    %900 = vsyncpa [#allocation4], 1

</llo_original>
